<compile_context>
chip_gen: v7x
topology: tpu7x:2x2x1
jax: 0.10.0
libtpu: 0.0.40
codegen_flags: <defaults>
</compile_context>

<pallas_src>
import functools

import jax
import jax.numpy as jnp
import numpy as np
from jax.experimental import pallas as pl
from jax.experimental.pallas import tpu as pltpu


def _round_up(n, m):
    return ((n + m - 1) // m) * m


def _mish_fast(x):
    # mish(x) = x * tanh(softplus(x)) = x * v / (v + 2),  v = u*(u+2), u=exp(x)
    # Exact identity; exp is clamped so large x saturates to ~x without inf.
    u = jnp.exp(jnp.minimum(x, 20.0))
    v = u * (u + 2.0)
    return x * v * pl.reciprocal(v + 2.0, approx=True)


def _prenet_kernel(x_ref, halo_ref, w1_ref, b1_ref, w2_ref, b2_ref,
                   fcw_ref, fcb_ref, *rest, seq_len, dot_dtype):
    """One (batch, time-tile) grid step.

    x_ref:    (1, TILE_T, H) f32   non-overlapping time tile (read in place)
    halo_ref: (1, 1, 4, H)   f32   rows [t0-2, t0-1, t0+TILE_T, t0+TILE_T+1]
                                   (pre-zeroed where outside [0, T))
    w1/w2:    (3, H, H) dot_dtype  per-tap conv weights (tap k hits x[t-1+k])
    fcw:      (H, O)   dot_dtype   fc weight
    b*/fcb:   (1, H/O) f32         biases
    rest:     [mask_ref (1, TILE_T, 1) f32  -- optional], o_ref (1, TILE_T, O)
    """
    mask_ref = rest[0] if len(rest) == 2 else None
    o_ref = rest[-1]

    tt = x_ref.shape[1]
    t0 = pl.program_id(1) * tt

    xm = x_ref[0]                                          # (tt, H) f32
    # Rows past the end of the sequence (partial last tile) are undefined
    # pad-reads; zero them so conv1 sees PyTorch's zero padding at t >= T.
    g0 = t0 + jax.lax.broadcasted_iota(jnp.int32, xm.shape, 0)
    xm = jnp.where(g0 < seq_len, xm, 0.0)

    halo = halo_ref[0, 0]                                  # (4, H) f32
    x_ext = jnp.concatenate([halo[0:2], xm, halo[2:4]], axis=0)   # (tt+4, H)
    xb = x_ext.astype(dot_dtype)

    # conv1 over ext rows 1 .. tt+2 (one extra row each side for conv2):
    # three accumulating K=H MXU dots (no concat buffer; MRB-friendly on v7x).
    # NOTE: on v5e a single fused K=3H dot of the lane-concat is marginally
    # better (128-deep MXU); kept as-is since v6e/v7x are the priority.
    acc1 = b1_ref[0]
    for k in range(3):
        acc1 = acc1 + jnp.dot(xb[k:k + tt + 2], w1_ref[k],
                              preferred_element_type=jnp.float32)
    h1 = _mish_fast(acc1)

    # conv2 must see zeros for global times outside [0, T) (PyTorch zero-pads
    # conv1's length-T output before conv2).
    g1 = t0 - 1 + jax.lax.broadcasted_iota(jnp.int32, h1.shape, 0)
    h1 = jnp.where((g1 >= 0) & (g1 < seq_len), h1, 0.0)

    h1b = h1.astype(dot_dtype)
    acc2 = b2_ref[0]
    for k in range(3):
        acc2 = acc2 + jnp.dot(h1b[k:k + tt], w2_ref[k],
                              preferred_element_type=jnp.float32)
    h2 = _mish_fast(acc2)

    # Dropout is identity at inference.  Residual is the unshifted main tile.
    out = (jnp.dot(h2.astype(dot_dtype), fcw_ref[...],
                   preferred_element_type=jnp.float32)
           + fcb_ref[0] + xm)
    if mask_ref is not None:
        out = out * (1.0 - mask_ref[0])                    # masked_fill(mask, 0)
    o_ref[0] = out.astype(o_ref.dtype)


def prenet_forward(x, params, mask=None, *, tile_t=1024, dot_dtype=jnp.bfloat16):
    """x: (B, T, H) f32; mask: optional (B, T) bool. Returns (B, T, out_dim)."""
    B, T, H = x.shape
    out_dim = params["fcw"].shape[1]
    assert out_dim == H, "residual add requires out_dim == hidden_dim"

    # ---- time-tile selection ------------------------------------------------
    # Big tiles amortize the ~0.35us per-grid-step overhead; cap by a rough
    # live-VMEM bound, and keep >= 2 tiles when B == 1 for v7x's 2 TensorCores.
    bytes_per_row = H * 48 + out_dim * 16          # generous live bytes per row
    cap_rows = max(8, ((12 << 20) // bytes_per_row) // 8 * 8)
    TILE_T = min(tile_t, cap_rows, _round_up(T, 8))
    if B == 1:
        TILE_T = min(TILE_T, _round_up(pl.cdiv(T, 2), 8))
    TILE_T = max(8, _round_up(TILE_T, 8))
    n_tiles = pl.cdiv(T, TILE_T)

    # ---- parameters (bf16 matmul operands, f32 biases) ----------------------
    w1f = params["w1"].astype(dot_dtype)           # (3, H, H)
    w2f = params["w2"].astype(dot_dtype)           # (3, H, H)
    fcw = params["fcw"].astype(dot_dtype)          # (H, O)
    b1, b2, fcb = params["b1"], params["b2"], params["fcb"]

    # ---- halo rows only (4 rows / tile); x itself is read in place ----------
    zero_row = jnp.zeros((B, 1, H), x.dtype)
    tiles = []
    for i in range(n_tiles):
        idx = (i * TILE_T - 2, i * TILE_T - 1,
               (i + 1) * TILE_T, (i + 1) * TILE_T + 1)
        rows = [x[:, r:r + 1, :] if 0 <= r < T else zero_row for r in idx]
        tiles.append(jnp.concatenate(rows, axis=1))
    x_halo = jnp.stack(tiles, axis=1)              # (B, n_tiles, 4, H)

    const = lambda a: pl.BlockSpec(a.shape, lambda b, i, _nd=a.ndim: (0,) * _nd)
    inputs = [x, x_halo, w1f, b1, w2f, b2, fcw, fcb]
    in_specs = [
        pl.BlockSpec((1, TILE_T, H), lambda b, i: (b, i, 0)),
        pl.BlockSpec((1, 1, 4, H), lambda b, i: (b, i, 0, 0)),
        const(w1f), const(b1), const(w2f), const(b2), const(fcw), const(fcb),
    ]
    if mask is not None:
        m = mask.astype(jnp.float32).reshape(B, T, 1)
        inputs.append(m)
        in_specs.append(pl.BlockSpec((1, TILE_T, 1), lambda b, i: (b, i, 0)))

    kernel = functools.partial(_prenet_kernel, seq_len=T, dot_dtype=dot_dtype)

    # ---- VMEM budget: ~need + small headroom, capped for v7x (64 MiB/TC) ----
    dot_bytes = jnp.dtype(dot_dtype).itemsize
    weight_bytes = ((w1f.size + w2f.size + fcw.size) * dot_bytes
                    + (b1.size + b2.size + fcb.size) * 4)
    block_bytes = (TILE_T * (H + out_dim + 1) + 4 * H) * 4
    need = 2 * weight_bytes + 2 * 2 * block_bytes + TILE_T * bytes_per_row
    vmem_limit = int(min(48 << 20, max(8 << 20, need + (4 << 20))))

    cost = pl.CostEstimate(
        flops=2 * B * T * (2 * 3 * H * H + H * out_dim),
        transcendentals=4 * B * T * H,
        bytes_accessed=int(x.size * 4 + B * T * out_dim * 4
                           + x_halo.size * 4 + weight_bytes),
    )

    out = pl.pallas_call(
        kernel,
        out_shape=jax.ShapeDtypeStruct((B, T, out_dim), x.dtype),
        grid_spec=pltpu.PrefetchScalarGridSpec(
            num_scalar_prefetch=0,
            grid=(B, n_tiles),
            in_specs=in_specs,
            out_specs=pl.BlockSpec((1, TILE_T, out_dim), lambda b, i: (b, i, 0)),
        ),
        compiler_params=pltpu.CompilerParams(
            dimension_semantics=("parallel", "parallel"),
            vmem_limit_bytes=vmem_limit),
        cost_estimate=cost,
    )(*inputs)
    return out


def init_params(key, hidden_dim, out_dim):
    """Deterministic synthetic parameters (shapes match the PyTorch module)."""
    ks = jax.random.split(key, 6)
    scale = 0.1
    # PyTorch Conv1d weight is (out_ch, in_ch, k); store as (k, in, out).
    w1_t = scale * jax.random.normal(ks[0], (hidden_dim, hidden_dim, 3), jnp.float32)
    w2_t = scale * jax.random.normal(ks[1], (hidden_dim, hidden_dim, 3), jnp.float32)
    w1 = jnp.transpose(w1_t, (2, 1, 0))
    w2 = jnp.transpose(w2_t, (2, 1, 0))
    b1 = scale * jax.random.normal(ks[2], (1, hidden_dim), jnp.float32)
    b2 = scale * jax.random.normal(ks[3], (1, hidden_dim), jnp.float32)
    # Linear: PyTorch weight is (out, in); store transposed (in, out).
    fcw = scale * jax.random.normal(ks[4], (hidden_dim, out_dim), jnp.float32)
    fcb = scale * jax.random.normal(ks[5], (1, out_dim), jnp.float32)
    return dict(w1=w1, b1=b1, w2=w2, b2=b2, fcw=fcw, fcb=fcb)


def _reference(x, params, mask=None, dot_dtype=jnp.bfloat16):
    """Pure-JAX reference (same bf16-at-the-matmul convention as the kernel)."""
    def mish(v):
        return v * jnp.tanh(jax.nn.softplus(v))

    def conv3(h, w, b):     # h: (B,T,H), w: (3, in, out), b: (1, H)
        hp = jnp.pad(h, ((0, 0), (1, 1), (0, 0)))
        taps = (hp[:, :-2], hp[:, 1:-1], hp[:, 2:])
        y = sum(jnp.einsum("bti,io->bto", t.astype(dot_dtype),
                           w[k].astype(dot_dtype),
                           preferred_element_type=jnp.float32)
                for k, t in enumerate(taps))
        return y + b[0]

    h1 = mish(conv3(x, params["w1"], params["b1"]))
    h2 = mish(conv3(h1, params["w2"], params["b2"]))
    out = jnp.einsum("bti,io->bto", h2.astype(dot_dtype),
                     params["fcw"].astype(dot_dtype),
                     preferred_element_type=jnp.float32)
    out = out + params["fcb"][0] + x
    if mask is not None:
        out = jnp.where(mask[..., None], 0.0, out)
    return out


if __name__ == "__main__":
    key = jax.random.PRNGKey(0)
    kx, kp, kx2, km = jax.random.split(key, 4)

    # Small shapes consistent with the module: batch=2, seq=8, hidden=32.
    B, T, H = 2, 8, 32
    x = jax.random.normal(kx, (B, T, H), jnp.float32)
    params = init_params(kp, H, H)

    out = jax.block_until_ready(prenet_forward(x, params))
    ref = _reference(x, params)
    np.testing.assert_allclose(np.asarray(out), np.asarray(ref),
                               rtol=5e-3, atol=5e-3)

    # Multi-tile path: partial last tile, halo handling, and an in-kernel mask.
    T2 = 40
    x2 = jax.random.normal(kx2, (B, T2, H), jnp.float32)
    mask2 = jax.random.bernoulli(km, 0.3, (B, T2))
    out2 = jax.block_until_ready(prenet_forward(x2, params, mask=mask2, tile_t=16))
    ref2 = _reference(x2, params, mask=mask2)
    np.testing.assert_allclose(np.asarray(out2), np.asarray(ref2),
                               rtol=5e-3, atol=5e-3)

    print("KERNEL_OK")
</pallas_src>

<mosaic_0001>
module attributes {stable_mosaic.version = 11 : i64} {
  func.func @_prenet_kernel(%arg0: i32, %arg1: i32, %arg2: memref<1x8x32xf32, #tpu.memory_space<vmem>>, %arg3: memref<1x1x4x32xf32, #tpu.memory_space<vmem>>, %arg4: memref<3x32x32xbf16, #tpu.memory_space<vmem>>, %arg5: memref<1x32xf32, #tpu.memory_space<vmem>>, %arg6: memref<3x32x32xbf16, #tpu.memory_space<vmem>>, %arg7: memref<1x32xf32, #tpu.memory_space<vmem>>, %arg8: memref<32x32xbf16, #tpu.memory_space<vmem>>, %arg9: memref<1x32xf32, #tpu.memory_space<vmem>>, %arg10: memref<1x8x32xf32, #tpu.memory_space<vmem>>) attributes {dimension_semantics = [#tpu.dimension_semantics<parallel>, #tpu.dimension_semantics<parallel>], iteration_bounds = array<i64: 2, 1>, scalar_prefetch = 0 : i64, scratch_operands = 0 : i64, tpu.core_type = #tpu.core_type<tc>, window_params = [{transform_indices = @transform_0, window_bounds = array<i64: 1, 8, 32>}, {transform_indices = @transform_1, window_bounds = array<i64: 1, 1, 4, 32>}, {pipeline_mode = #tpu.pipeline_mode<synchronous>, transform_indices = @transform_2, window_bounds = array<i64: 3, 32, 32>}, {pipeline_mode = #tpu.pipeline_mode<synchronous>, transform_indices = @transform_3, window_bounds = array<i64: 1, 32>}, {pipeline_mode = #tpu.pipeline_mode<synchronous>, transform_indices = @transform_4, window_bounds = array<i64: 3, 32, 32>}, {pipeline_mode = #tpu.pipeline_mode<synchronous>, transform_indices = @transform_5, window_bounds = array<i64: 1, 32>}, {pipeline_mode = #tpu.pipeline_mode<synchronous>, transform_indices = @transform_6, window_bounds = array<i64: 32, 32>}, {pipeline_mode = #tpu.pipeline_mode<synchronous>, transform_indices = @transform_7, window_bounds = array<i64: 1, 32>}, {transform_indices = @transform_8, window_bounds = array<i64: 1, 8, 32>}]} {
    %c8_i32 = arith.constant 8 : i32
    %0 = arith.muli %arg1, %c8_i32 : i32
    %c0 = arith.constant 0 : index
    %c0_0 = arith.constant 0 : index
    %c0_1 = arith.constant 0 : index
    %1 = vector.load %arg2[%c0, %c0_0, %c0_1] : memref<1x8x32xf32, #tpu.memory_space<vmem>>, vector<1x8x32xf32>
    %2 = vector.shape_cast %1 : vector<1x8x32xf32> to vector<8x32xf32>
    %3 = tpu.iota {dimensions = array<i32: 0>} : vector<8x32xi32>
    %4 = vector.broadcast %0 : i32 to vector<8x32xi32>
    %5 = arith.addi %4, %3 : vector<8x32xi32>
    %c8_i32_2 = arith.constant 8 : i32
    %6 = vector.broadcast %c8_i32_2 : i32 to vector<8x32xi32>
    %7 = arith.cmpi slt, %5, %6 : vector<8x32xi32>
    %cst = arith.constant 0.000000e+00 : f32
    %8 = vector.broadcast %cst : f32 to vector<8x32xf32>
    %9 = arith.select %7, %2, %8 : vector<8x32xi1>, vector<8x32xf32>
    %c0_3 = arith.constant 0 : index
    %c0_4 = arith.constant 0 : index
    %c0_5 = arith.constant 0 : index
    %c0_6 = arith.constant 0 : index
    %10 = vector.load %arg3[%c0_3, %c0_4, %c0_5, %c0_6] : memref<1x1x4x32xf32, #tpu.memory_space<vmem>>, vector<1x1x4x32xf32>
    %11 = vector.shape_cast %10 : vector<1x1x4x32xf32> to vector<4x32xf32>
    %12 = vector.extract_strided_slice %11 {offsets = [0, 0], sizes = [2, 32], strides = [1, 1]} : vector<4x32xf32> to vector<2x32xf32>
    %13 = vector.extract_strided_slice %11 {offsets = [2, 0], sizes = [2, 32], strides = [1, 1]} : vector<4x32xf32> to vector<2x32xf32>
    %14 = tpu.concatenate %12, %9, %13 in 0 : vector<2x32xf32>, vector<8x32xf32>, vector<2x32xf32> -> vector<12x32xf32>
    %15 = arith.truncf %14 : vector<12x32xf32> to vector<12x32xbf16>
    %c0_7 = arith.constant 0 : index
    %c0_8 = arith.constant 0 : index
    %16 = vector.load %arg5[%c0_7, %c0_8] : memref<1x32xf32, #tpu.memory_space<vmem>>, vector<1x32xf32>
    %17 = vector.shape_cast %16 : vector<1x32xf32> to vector<32xf32>
    %18 = vector.extract_strided_slice %15 {offsets = [0, 0], sizes = [10, 32], strides = [1, 1]} : vector<12x32xbf16> to vector<10x32xbf16>
    %c0_9 = arith.constant 0 : index
    %c0_10 = arith.constant 0 : index
    %c0_11 = arith.constant 0 : index
    %19 = vector.load %arg4[%c0_9, %c0_10, %c0_11] : memref<3x32x32xbf16, #tpu.memory_space<vmem>>, vector<1x32x32xbf16>
    %20 = vector.shape_cast %19 : vector<1x32x32xbf16> to vector<32x32xbf16>
    %cst_12 = arith.constant dense<0.000000e+00> : vector<10x32xf32>
    %21 = tpu.matmul %18, %20, %cst_12 {dimension_numbers = #tpu.dot_dimension_numbers<[1], [0], [0], [1], [0, 0, 1, 1], [], []>} : vector<10x32xbf16>, vector<32x32xbf16>, vector<10x32xf32> -> vector<10x32xf32>
    %22 = vector.shape_cast %17 : vector<32xf32> to vector<1x32xf32>
    %23 = vector.broadcast %22 : vector<1x32xf32> to vector<10x32xf32>
    %24 = arith.addf %23, %21 : vector<10x32xf32>
    %25 = vector.extract_strided_slice %15 {offsets = [1, 0], sizes = [10, 32], strides = [1, 1]} : vector<12x32xbf16> to vector<10x32xbf16>
    %c1 = arith.constant 1 : index
    %c0_13 = arith.constant 0 : index
    %c0_14 = arith.constant 0 : index
    %26 = vector.load %arg4[%c1, %c0_13, %c0_14] : memref<3x32x32xbf16, #tpu.memory_space<vmem>>, vector<1x32x32xbf16>
    %27 = vector.shape_cast %26 : vector<1x32x32xbf16> to vector<32x32xbf16>
    %cst_15 = arith.constant dense<0.000000e+00> : vector<10x32xf32>
    %28 = tpu.matmul %25, %27, %cst_15 {dimension_numbers = #tpu.dot_dimension_numbers<[1], [0], [0], [1], [0, 0, 1, 1], [], []>} : vector<10x32xbf16>, vector<32x32xbf16>, vector<10x32xf32> -> vector<10x32xf32>
    %29 = arith.addf %24, %28 : vector<10x32xf32>
    %30 = vector.extract_strided_slice %15 {offsets = [2, 0], sizes = [10, 32], strides = [1, 1]} : vector<12x32xbf16> to vector<10x32xbf16>
    %c2 = arith.constant 2 : index
    %c0_16 = arith.constant 0 : index
    %c0_17 = arith.constant 0 : index
    %31 = vector.load %arg4[%c2, %c0_16, %c0_17] : memref<3x32x32xbf16, #tpu.memory_space<vmem>>, vector<1x32x32xbf16>
    %32 = vector.shape_cast %31 : vector<1x32x32xbf16> to vector<32x32xbf16>
    %cst_18 = arith.constant dense<0.000000e+00> : vector<10x32xf32>
    %33 = tpu.matmul %30, %32, %cst_18 {dimension_numbers = #tpu.dot_dimension_numbers<[1], [0], [0], [1], [0, 0, 1, 1], [], []>} : vector<10x32xbf16>, vector<32x32xbf16>, vector<10x32xf32> -> vector<10x32xf32>
    %34 = arith.addf %29, %33 : vector<10x32xf32>
    %cst_19 = arith.constant 2.000000e+01 : f32
    %35 = vector.broadcast %cst_19 : f32 to vector<10x32xf32>
    %36 = arith.minimumf %34, %35 : vector<10x32xf32>
    %37 = math.exp %36 : vector<10x32xf32>
    %cst_20 = arith.constant 2.000000e+00 : f32
    %38 = vector.broadcast %cst_20 : f32 to vector<10x32xf32>
    %39 = arith.addf %37, %38 : vector<10x32xf32>
    %40 = arith.mulf %37, %39 : vector<10x32xf32>
    %41 = arith.mulf %34, %40 : vector<10x32xf32>
    %cst_21 = arith.constant 2.000000e+00 : f32
    %42 = vector.broadcast %cst_21 : f32 to vector<10x32xf32>
    %43 = arith.addf %40, %42 : vector<10x32xf32>
    %44 = tpu.reciprocal %43 {approx = true} : vector<10x32xf32> -> vector<10x32xf32>
    %45 = arith.mulf %41, %44 : vector<10x32xf32>
    %c1_i32 = arith.constant 1 : i32
    %46 = arith.subi %0, %c1_i32 : i32
    %47 = tpu.iota {dimensions = array<i32: 0>} : vector<10x32xi32>
    %48 = vector.broadcast %46 : i32 to vector<10x32xi32>
    %49 = arith.addi %48, %47 : vector<10x32xi32>
    %c0_i32 = arith.constant 0 : i32
    %50 = vector.broadcast %c0_i32 : i32 to vector<10x32xi32>
    %51 = arith.cmpi sge, %49, %50 : vector<10x32xi32>
    %c8_i32_22 = arith.constant 8 : i32
    %52 = vector.broadcast %c8_i32_22 : i32 to vector<10x32xi32>
    %53 = arith.cmpi slt, %49, %52 : vector<10x32xi32>
    %54 = arith.andi %51, %53 : vector<10x32xi1>
    %cst_23 = arith.constant 0.000000e+00 : f32
    %55 = vector.broadcast %cst_23 : f32 to vector<10x32xf32>
    %56 = arith.select %54, %45, %55 : vector<10x32xi1>, vector<10x32xf32>
    %57 = arith.truncf %56 : vector<10x32xf32> to vector<10x32xbf16>
    %c0_24 = arith.constant 0 : index
    %c0_25 = arith.constant 0 : index
    %58 = vector.load %arg7[%c0_24, %c0_25] : memref<1x32xf32, #tpu.memory_space<vmem>>, vector<1x32xf32>
    %59 = vector.shape_cast %58 : vector<1x32xf32> to vector<32xf32>
    %60 = vector.extract_strided_slice %57 {offsets = [0, 0], sizes = [8, 32], strides = [1, 1]} : vector<10x32xbf16> to vector<8x32xbf16>
    %c0_26 = arith.constant 0 : index
    %c0_27 = arith.constant 0 : index
    %c0_28 = arith.constant 0 : index
    %61 = vector.load %arg6[%c0_26, %c0_27, %c0_28] : memref<3x32x32xbf16, #tpu.memory_space<vmem>>, vector<1x32x32xbf16>
    %62 = vector.shape_cast %61 : vector<1x32x32xbf16> to vector<32x32xbf16>
    %cst_29 = arith.constant dense<0.000000e+00> : vector<8x32xf32>
    %63 = tpu.matmul %60, %62, %cst_29 {dimension_numbers = #tpu.dot_dimension_numbers<[1], [0], [0], [1], [0, 0, 1, 1], [], []>} : vector<8x32xbf16>, vector<32x32xbf16>, vector<8x32xf32> -> vector<8x32xf32>
    %64 = vector.shape_cast %59 : vector<32xf32> to vector<1x32xf32>
    %65 = vector.broadcast %64 : vector<1x32xf32> to vector<8x32xf32>
    %66 = arith.addf %65, %63 : vector<8x32xf32>
    %67 = vector.extract_strided_slice %57 {offsets = [1, 0], sizes = [8, 32], strides = [1, 1]} : vector<10x32xbf16> to vector<8x32xbf16>
    %c1_30 = arith.constant 1 : index
    %c0_31 = arith.constant 0 : index
    %c0_32 = arith.constant 0 : index
    %68 = vector.load %arg6[%c1_30, %c0_31, %c0_32] : memref<3x32x32xbf16, #tpu.memory_space<vmem>>, vector<1x32x32xbf16>
    %69 = vector.shape_cast %68 : vector<1x32x32xbf16> to vector<32x32xbf16>
    %cst_33 = arith.constant dense<0.000000e+00> : vector<8x32xf32>
    %70 = tpu.matmul %67, %69, %cst_33 {dimension_numbers = #tpu.dot_dimension_numbers<[1], [0], [0], [1], [0, 0, 1, 1], [], []>} : vector<8x32xbf16>, vector<32x32xbf16>, vector<8x32xf32> -> vector<8x32xf32>
    %71 = arith.addf %66, %70 : vector<8x32xf32>
    %72 = vector.extract_strided_slice %57 {offsets = [2, 0], sizes = [8, 32], strides = [1, 1]} : vector<10x32xbf16> to vector<8x32xbf16>
    %c2_34 = arith.constant 2 : index
    %c0_35 = arith.constant 0 : index
    %c0_36 = arith.constant 0 : index
    %73 = vector.load %arg6[%c2_34, %c0_35, %c0_36] : memref<3x32x32xbf16, #tpu.memory_space<vmem>>, vector<1x32x32xbf16>
    %74 = vector.shape_cast %73 : vector<1x32x32xbf16> to vector<32x32xbf16>
    %cst_37 = arith.constant dense<0.000000e+00> : vector<8x32xf32>
    %75 = tpu.matmul %72, %74, %cst_37 {dimension_numbers = #tpu.dot_dimension_numbers<[1], [0], [0], [1], [0, 0, 1, 1], [], []>} : vector<8x32xbf16>, vector<32x32xbf16>, vector<8x32xf32> -> vector<8x32xf32>
    %76 = arith.addf %71, %75 : vector<8x32xf32>
    %cst_38 = arith.constant 2.000000e+01 : f32
    %77 = vector.broadcast %cst_38 : f32 to vector<8x32xf32>
    %78 = arith.minimumf %76, %77 : vector<8x32xf32>
    %79 = math.exp %78 : vector<8x32xf32>
    %cst_39 = arith.constant 2.000000e+00 : f32
    %80 = vector.broadcast %cst_39 : f32 to vector<8x32xf32>
    %81 = arith.addf %79, %80 : vector<8x32xf32>
    %82 = arith.mulf %79, %81 : vector<8x32xf32>
    %83 = arith.mulf %76, %82 : vector<8x32xf32>
    %cst_40 = arith.constant 2.000000e+00 : f32
    %84 = vector.broadcast %cst_40 : f32 to vector<8x32xf32>
    %85 = arith.addf %82, %84 : vector<8x32xf32>
    %86 = tpu.reciprocal %85 {approx = true} : vector<8x32xf32> -> vector<8x32xf32>
    %87 = arith.mulf %83, %86 : vector<8x32xf32>
    %88 = arith.truncf %87 : vector<8x32xf32> to vector<8x32xbf16>
    %c0_41 = arith.constant 0 : index
    %c0_42 = arith.constant 0 : index
    %89 = vector.load %arg8[%c0_41, %c0_42] : memref<32x32xbf16, #tpu.memory_space<vmem>>, vector<32x32xbf16>
    %cst_43 = arith.constant dense<0.000000e+00> : vector<8x32xf32>
    %90 = tpu.matmul %88, %89, %cst_43 {dimension_numbers = #tpu.dot_dimension_numbers<[1], [0], [0], [1], [0, 0, 1, 1], [], []>} : vector<8x32xbf16>, vector<32x32xbf16>, vector<8x32xf32> -> vector<8x32xf32>
    %c0_44 = arith.constant 0 : index
    %c0_45 = arith.constant 0 : index
    %91 = vector.load %arg9[%c0_44, %c0_45] : memref<1x32xf32, #tpu.memory_space<vmem>>, vector<1x32xf32>
    %92 = vector.shape_cast %91 : vector<1x32xf32> to vector<32xf32>
    %93 = vector.shape_cast %92 : vector<32xf32> to vector<1x32xf32>
    %94 = vector.broadcast %93 : vector<1x32xf32> to vector<8x32xf32>
    %95 = arith.addf %90, %94 : vector<8x32xf32>
    %96 = arith.addf %95, %9 : vector<8x32xf32>
    %c0_46 = arith.constant 0 : index
    %c0_47 = arith.constant 0 : index
    %c0_48 = arith.constant 0 : index
    %97 = vector.load %arg10[%c0_46, %c0_47, %c0_48] : memref<1x8x32xf32, #tpu.memory_space<vmem>>, vector<1x8x32xf32>
    %98 = vector.shape_cast %97 : vector<1x8x32xf32> to vector<8x32xf32>
    %99 = vector.shape_cast %96 : vector<8x32xf32> to vector<1x8x32xf32>
    tpu.vector_store %arg10[%c0_46, %c0_47, %c0_48], %99 {strides = array<i32>} : memref<1x8x32xf32, #tpu.memory_space<vmem>>, vector<1x8x32xf32>,
    return
  }
  func.func @transform_0(%arg0: i32, %arg1: i32) -> (i32, i32, i32) {
    %c0_i32 = arith.constant 0 : i32
    %c0_i32_0 = arith.constant 0 : i32
    return %arg0, %arg1, %c0_i32 : i32, i32, i32
  }
  func.func @transform_1(%arg0: i32, %arg1: i32) -> (i32, i32, i32, i32) {
    %c0_i32 = arith.constant 0 : i32
    %c0_i32_0 = arith.constant 0 : i32
    %c0_i32_1 = arith.constant 0 : i32
    return %arg0, %arg1, %c0_i32, %c0_i32_0 : i32, i32, i32, i32
  }
  func.func @transform_2(%arg0: i32, %arg1: i32) -> (i32, i32, i32) {
    %c0_i32 = arith.constant 0 : i32
    %c0_i32_0 = arith.constant 0 : i32
    %c0_i32_1 = arith.constant 0 : i32
    %c0_i32_2 = arith.constant 0 : i32
    return %c0_i32, %c0_i32_0, %c0_i32_1 : i32, i32, i32
  }
  func.func @transform_3(%arg0: i32, %arg1: i32) -> (i32, i32) {
    %c0_i32 = arith.constant 0 : i32
    %c0_i32_0 = arith.constant 0 : i32
    %c0_i32_1 = arith.constant 0 : i32
    return %c0_i32, %c0_i32_0 : i32, i32
  }
  func.func @transform_4(%arg0: i32, %arg1: i32) -> (i32, i32, i32) {
    %c0_i32 = arith.constant 0 : i32
    %c0_i32_0 = arith.constant 0 : i32
    %c0_i32_1 = arith.constant 0 : i32
    %c0_i32_2 = arith.constant 0 : i32
    return %c0_i32, %c0_i32_0, %c0_i32_1 : i32, i32, i32
  }
  func.func @transform_5(%arg0: i32, %arg1: i32) -> (i32, i32) {
    %c0_i32 = arith.constant 0 : i32
    %c0_i32_0 = arith.constant 0 : i32
    %c0_i32_1 = arith.constant 0 : i32
    return %c0_i32, %c0_i32_0 : i32, i32
  }
  func.func @transform_6(%arg0: i32, %arg1: i32) -> (i32, i32) {
    %c0_i32 = arith.constant 0 : i32
    %c0_i32_0 = arith.constant 0 : i32
    %c0_i32_1 = arith.constant 0 : i32
    return %c0_i32, %c0_i32_0 : i32, i32
  }
  func.func @transform_7(%arg0: i32, %arg1: i32) -> (i32, i32) {
    %c0_i32 = arith.constant 0 : i32
    %c0_i32_0 = arith.constant 0 : i32
    %c0_i32_1 = arith.constant 0 : i32
    return %c0_i32, %c0_i32_0 : i32, i32
  }
  func.func @transform_8(%arg0: i32, %arg1: i32) -> (i32, i32, i32) {
    %c0_i32 = arith.constant 0 : i32
    %c0_i32_0 = arith.constant 0 : i32
    return %arg0, %arg1, %c0_i32 : i32, i32, i32
  }
}

</mosaic_0001>

<llo_original>
// kernel: tpu_custom_call.1
$region0: #{tpu_custom_call.1}
  #allocation0 [shape = 'u32[]', space=smem, size = 0x4, offset = 0x4, fixed_abs, tag = 'smem constant byte address 0x4 - core index']
  #allocation1 [shape = 'u32[144,128]{1,0:T(1,128)}', space=vmem, size = 0x12000, scoped, tag = 'internal scratch']
  %s0 = inlined_call_operand.hbm [shape: f32[2,8,32], index: 0, kind: input, shape index: {}]
  %s1 = inlined_call_operand.hbm [shape: f32[2,1,4,32], index: 1, kind: input, shape index: {}]
  %s2 = inlined_call_operand.hbm [shape: bf16[3,32,32], index: 2, kind: input, shape index: {}]
  %s3 = inlined_call_operand.vmem [shape: f32[1,32], index: 3, kind: input, shape index: {}]
  %s4 = inlined_call_operand.hbm [shape: bf16[3,32,32], index: 4, kind: input, shape index: {}]
  %s5 = inlined_call_operand.vmem [shape: f32[1,32], index: 5, kind: input, shape index: {}]
  %s6 = inlined_call_operand.vmem [shape: bf16[32,32], index: 6, kind: input, shape index: {}]
  %s7 = inlined_call_operand.vmem [shape: f32[1,32], index: 7, kind: input, shape index: {}]
  %s8 = inlined_call_operand.hbm [shape: f32[2,8,32], index: 8, kind: output, shape index: {}]
  %s9 = sld [smem:[#allocation0]]
  $region81: #{tpu_custom_call.1} parent=0
    _
  %s11 = ssub.s32 1, %s9
  %s12 = scalar_select 0, %s11, %s9
  $region1: #{tpu_custom_call.1} parent=0
    #allocation2 [shape = 'u8[8192]{0}', space=vmem, size = 0x2000, scoped, tag = 'input window, operand 0']
    #allocation3 [shape = 's32[2]{0}', space=sflag, size = 0x8, scoped, tag = 'scoped memory for tpu_custom_call.1']
    #allocation4 [shape = 's32[2]{0}', space=sflag, size = 0x8, scoped, tag = 'scoped memory for tpu_custom_call.1']
    #allocation5 [shape = 'u8[4096]{0}', space=vmem, size = 0x1000, scoped, tag = 'input window, operand 1']
    #allocation6 [shape = 's32[2]{0}', space=sflag, size = 0x8, scoped, tag = 'scoped memory for tpu_custom_call.1']
    #allocation7 [shape = 'u8[24576]{0}', space=vmem, size = 0x6000, scoped, tag = 'input window, operand 2, single buffered']
    #allocation8 [shape = 'u8[24576]{0}', space=vmem, size = 0x6000, scoped, tag = 'input window, operand 4, single buffered']
    #allocation9 [shape = 's32[1]{0}', space=sflag, size = 0x4, scoped, tag = 'scoped memory for tpu_custom_call.1']
    #allocation10 [shape = 'u8[8192]{0}', space=vmem, size = 0x2000, scoped, tag = 'output window, operand 0']
    %13 = vsyncpa [#allocation3], 0
    %s14 = scalar_lea.sflag [#allocation3], 1
    %15 = vsyncpa %s14, 0
    %16 = vsyncpa [#allocation6], 0
    %s17 = scalar_lea.sflag [#allocation6], 1
    %18 = vsyncpa %s17, 0
    %19 = vsyncpa [#allocation9], 0
    %20 = vsyncpa [#allocation4], 0
    %s21 = scalar_lea.sflag [#allocation4], 1
    %22 = vsyncpa %s21, 0
    loop: start=0, step=1, limit=4
    $region2: #{tpu_custom_call.1} parent=1 // loop_pre_header
      _
    $region3: #{tpu_custom_call.1} parent=1 // loop_header
      %s24 = sphi 0, %s28
      %p25 = scmp.ge.s32.totalorder %s24, 4
      %s31 = sphi 0, %s43
      %s32 = sphi 0, %s39
      %s33 = sphi 0, %s31
      %s34 = sphi 0, %s32
      %s35 = sphi 0, %s33
      %s36 = sphi 0, %s34
      %s48 = sphi 0, %s50
      %s51 = sphi 0, %s48
      %s52 = sphi 0, %s51
      %s68 = sphi 0, %s52
      %s76 = sphi 0, %s78
      %s79 = sphi 0, %s76
      %s80 = sphi 0, %s79
      %s96 = sphi 0, %s80
      %s100 = sphi 0, %s100
      %s102 = sphi 0, %s100
      %s103 = sphi 0, %s102
      %s117 = sphi 0, %s103
      %s121 = sphi 0, %s121
      %s123 = sphi 0, %s121
      %s124 = sphi 0, %s123
      %s138 = sphi 0, %s124
      %s142 = sphi 0, %s142
      %s144 = sphi 0, %s142
      %s145 = sphi 0, %s144
      %s159 = sphi 0, %s145
      %s163 = sphi 0, %s163
      %s165 = sphi 0, %s163
      %s166 = sphi 0, %s165
      %s180 = sphi 0, %s166
      %s184 = sphi 0, %s184
      %s186 = sphi 0, %s184
      %s187 = sphi 0, %s186
      %s201 = sphi 0, %s187
      %s205 = sphi 0, %s205
      %s207 = sphi 0, %s205
      %s208 = sphi 0, %s207
      %s222 = sphi 0, %s208
      %s230 = sphi 0, %s232
      %s233 = sphi 0, %s230
      %s234 = sphi 0, %s233
      %s250 = sphi 0, %s234
    $region4: #{tpu_custom_call.1} parent=1 // loop_header_branch
      %27 = sbr.rel (%p25) target = $region8
    $region5: #{tpu_custom_call.1} parent=1 // loop_body
      %s29 = ssub.s32 %s24, 1
      %s30 = ssub.s32 %s24, 2
      %s37 = sadd.s32 1, %s32
      %p38 = scmp.ge.s32.totalorder %s37, 1
      %s39 = scalar_select %p38, 0, %s37
      %s40 = sadd.s32 1, %s31
      %s41 = scalar_select %p38, %s40, %s31
      %p42 = scmp.ge.s32.totalorder %s41, 2
      %s43 = scalar_select %p42, 0, %s41
      %s44 = ssub.s32 %s31, %s43
      %s45 = ssub.s32 %s32, %s39
      %s46 = sor.u32 %s44, %s45
      %p47 = scmp.eq.s32.totalorder %s46, 0
      %s49 = sadd.s32 %s48, 1
      %s50 = scalar_select %p47, %s48, %s49
      %p53 = pneg %p47
      %p54 = scmp.eq.s32.totalorder %s24, 1
      %p55 = por %p53, %p54
      %p56 = scmp.ne.s32.totalorder %s48, %s51
      %p57 = scmp.eq.s32.totalorder %s24, 0
      %p58 = por %p56, %p57
      %p59 = scmp.ne.s32.totalorder %s48, %s51
      %p60 = scmp.eq.s32.totalorder %s29, 1
      %p61 = por %p59, %p60
      %p62 = scmp.ne.s32.totalorder %s51, %s52
      %p63 = scmp.eq.s32.totalorder %s29, 0
      %p64 = por %p62, %p63
      %p65 = scmp.ne.s32.totalorder %s51, %s52
      %p66 = scmp.eq.s32.totalorder %s30, 1
      %p67 = por %p65, %p66
      %p69 = scmp.ne.s32.totalorder %s52, %s68
      %p70 = scmp.eq.s32.totalorder %s30, 0
      %p71 = por %p69, %p70
      %s72 = ssub.s32 %s31, %s43
      %s73 = ssub.s32 %s32, %s39
      %s74 = sor.u32 %s72, %s73
      %p75 = scmp.eq.s32.totalorder %s74, 0
      %s77 = sadd.s32 %s76, 1
      %s78 = scalar_select %p75, %s76, %s77
      %p81 = pneg %p75
      %p82 = scmp.eq.s32.totalorder %s24, 1
      %p83 = por %p81, %p82
      %p84 = scmp.ne.s32.totalorder %s76, %s79
      %p85 = scmp.eq.s32.totalorder %s24, 0
      %p86 = por %p84, %p85
      %p87 = scmp.ne.s32.totalorder %s76, %s79
      %p88 = scmp.eq.s32.totalorder %s29, 1
      %p89 = por %p87, %p88
      %p90 = scmp.ne.s32.totalorder %s79, %s80
      %p91 = scmp.eq.s32.totalorder %s29, 0
      %p92 = por %p90, %p91
      %p93 = scmp.ne.s32.totalorder %s79, %s80
      %p94 = scmp.eq.s32.totalorder %s30, 1
      %p95 = por %p93, %p94
      %p97 = scmp.ne.s32.totalorder %s80, %s96
      %p98 = scmp.eq.s32.totalorder %s30, 0
      %p99 = por %p97, %p98
      %s101 = sadd.s32 %s100, 1
      %p104 = scmp.eq.s32.totalorder %s24, 1
      %p105 = scmp.ne.s32.totalorder %s100, %s102
      %p106 = scmp.eq.s32.totalorder %s24, 0
      %p107 = por %p105, %p106
      %p108 = scmp.ne.s32.totalorder %s100, %s102
      %p109 = scmp.eq.s32.totalorder %s29, 1
      %p110 = por %p108, %p109
      %p111 = scmp.ne.s32.totalorder %s102, %s103
      %p112 = scmp.eq.s32.totalorder %s29, 0
      %p113 = por %p111, %p112
      %p114 = scmp.ne.s32.totalorder %s102, %s103
      %p115 = scmp.eq.s32.totalorder %s30, 1
      %p116 = por %p114, %p115
      %p118 = scmp.ne.s32.totalorder %s103, %s117
      %p119 = scmp.eq.s32.totalorder %s30, 0
      %p120 = por %p118, %p119
      %s122 = sadd.s32 %s121, 1
      %p125 = scmp.eq.s32.totalorder %s24, 1
      %p126 = scmp.ne.s32.totalorder %s121, %s123
      %p127 = scmp.eq.s32.totalorder %s24, 0
      %p128 = por %p126, %p127
      %p129 = scmp.ne.s32.totalorder %s121, %s123
      %p130 = scmp.eq.s32.totalorder %s29, 1
      %p131 = por %p129, %p130
      %p132 = scmp.ne.s32.totalorder %s123, %s124
      %p133 = scmp.eq.s32.totalorder %s29, 0
      %p134 = por %p132, %p133
      %p135 = scmp.ne.s32.totalorder %s123, %s124
      %p136 = scmp.eq.s32.totalorder %s30, 1
      %p137 = por %p135, %p136
      %p139 = scmp.ne.s32.totalorder %s124, %s138
      %p140 = scmp.eq.s32.totalorder %s30, 0
      %p141 = por %p139, %p140
      %s143 = sadd.s32 %s142, 1
      %p146 = scmp.eq.s32.totalorder %s24, 1
      %p147 = scmp.ne.s32.totalorder %s142, %s144
      %p148 = scmp.eq.s32.totalorder %s24, 0
      %p149 = por %p147, %p148
      %p150 = scmp.ne.s32.totalorder %s142, %s144
      %p151 = scmp.eq.s32.totalorder %s29, 1
      %p152 = por %p150, %p151
      %p153 = scmp.ne.s32.totalorder %s144, %s145
      %p154 = scmp.eq.s32.totalorder %s29, 0
      %p155 = por %p153, %p154
      %p156 = scmp.ne.s32.totalorder %s144, %s145
      %p157 = scmp.eq.s32.totalorder %s30, 1
      %p158 = por %p156, %p157
      %p160 = scmp.ne.s32.totalorder %s145, %s159
      %p161 = scmp.eq.s32.totalorder %s30, 0
      %p162 = por %p160, %p161
      %s164 = sadd.s32 %s163, 1
      %p167 = scmp.eq.s32.totalorder %s24, 1
      %p168 = scmp.ne.s32.totalorder %s163, %s165
      %p169 = scmp.eq.s32.totalorder %s24, 0
      %p170 = por %p168, %p169
      %p171 = scmp.ne.s32.totalorder %s163, %s165
      %p172 = scmp.eq.s32.totalorder %s29, 1
      %p173 = por %p171, %p172
      %p174 = scmp.ne.s32.totalorder %s165, %s166
      %p175 = scmp.eq.s32.totalorder %s29, 0
      %p176 = por %p174, %p175
      %p177 = scmp.ne.s32.totalorder %s165, %s166
      %p178 = scmp.eq.s32.totalorder %s30, 1
      %p179 = por %p177, %p178
      %p181 = scmp.ne.s32.totalorder %s166, %s180
      %p182 = scmp.eq.s32.totalorder %s30, 0
      %p183 = por %p181, %p182
      %s185 = sadd.s32 %s184, 1
      %p188 = scmp.eq.s32.totalorder %s24, 1
      %p189 = scmp.ne.s32.totalorder %s184, %s186
      %p190 = scmp.eq.s32.totalorder %s24, 0
      %p191 = por %p189, %p190
      %p192 = scmp.ne.s32.totalorder %s184, %s186
      %p193 = scmp.eq.s32.totalorder %s29, 1
      %p194 = por %p192, %p193
      %p195 = scmp.ne.s32.totalorder %s186, %s187
      %p196 = scmp.eq.s32.totalorder %s29, 0
      %p197 = por %p195, %p196
      %p198 = scmp.ne.s32.totalorder %s186, %s187
      %p199 = scmp.eq.s32.totalorder %s30, 1
      %p200 = por %p198, %p199
      %p202 = scmp.ne.s32.totalorder %s187, %s201
      %p203 = scmp.eq.s32.totalorder %s30, 0
      %p204 = por %p202, %p203
      %s206 = sadd.s32 %s205, 1
      %p209 = scmp.eq.s32.totalorder %s24, 1
      %p210 = scmp.ne.s32.totalorder %s205, %s207
      %p211 = scmp.eq.s32.totalorder %s24, 0
      %p212 = por %p210, %p211
      %p213 = scmp.ne.s32.totalorder %s205, %s207
      %p214 = scmp.eq.s32.totalorder %s29, 1
      %p215 = por %p213, %p214
      %p216 = scmp.ne.s32.totalorder %s207, %s208
      %p217 = scmp.eq.s32.totalorder %s29, 0
      %p218 = por %p216, %p217
      %p219 = scmp.ne.s32.totalorder %s207, %s208
      %p220 = scmp.eq.s32.totalorder %s30, 1
      %p221 = por %p219, %p220
      %p223 = scmp.ne.s32.totalorder %s208, %s222
      %p224 = scmp.eq.s32.totalorder %s30, 0
      %p225 = por %p223, %p224
      %s226 = ssub.s32 %s31, %s43
      %s227 = ssub.s32 %s32, %s39
      %s228 = sor.u32 %s226, %s227
      %p229 = scmp.eq.s32.totalorder %s228, 0
      %s231 = sadd.s32 %s230, 1
      %s232 = scalar_select %p229, %s230, %s231
      %p235 = pneg %p229
      %p236 = scmp.eq.s32.totalorder %s24, 1
      %p237 = por %p235, %p236
      %p238 = scmp.ne.s32.totalorder %s230, %s233
      %p239 = scmp.eq.s32.totalorder %s24, 0
      %p240 = por %p238, %p239
      %p241 = scmp.ne.s32.totalorder %s230, %s233
      %p242 = scmp.eq.s32.totalorder %s29, 1
      %p243 = por %p241, %p242
      %p244 = scmp.ne.s32.totalorder %s233, %s234
      %p245 = scmp.eq.s32.totalorder %s29, 0
      %p246 = por %p244, %p245
      %p247 = scmp.ne.s32.totalorder %s233, %s234
      %p248 = scmp.eq.s32.totalorder %s30, 1
      %p249 = por %p247, %p248
      %p251 = scmp.ne.s32.totalorder %s234, %s250
      %p252 = scmp.eq.s32.totalorder %s30, 0
      %p253 = por %p251, %p252
      %p254 = scmp.le.s32.totalorder 1, %s24
      %p255 = scmp.lt.s32.totalorder %s24, 3
      %p256 = pnand %p254, %p255
      %p257 = pneg %p256
      // Predicated region
      $region9: #{tpu_custom_call.1} parent=5 // pred_check
        _
      $region10: #{tpu_custom_call.1} parent=5 // pred_check_branch
        %259 = sbr.rel (%p256) target = $region12
      $region11: #{tpu_custom_call.1} parent=5 // pred_region
        %s260 = ssub.s32 %s24, 1
        // Predicated region
        $region13: #{tpu_custom_call.1} parent=11 // pred_check
          %p261 = pneg %p113
        $region14: #{tpu_custom_call.1} parent=11 // pred_check_branch
          %263 = sbr.rel (%p261) target = $region16
        $region15: #{tpu_custom_call.1} parent=11 // pred_region
          %s265 = ssub.s32 768, 768
          %266 = vsyncadd [#allocation6], %s265
          %s267 = sshll.u32 [#allocation7], 4
          %s268 = int_to_ptr.vmem [resolvable:$true] %s267
          %273 = dma.hbm_to_vmem [thread:$0]  %s2, 768, %s268, [#allocation6], 64, 64, 4
        $region16: #{tpu_custom_call.1} parent=11 // pred_fallthru
          _
        // Predicated region
        $region17: #{tpu_custom_call.1} parent=11 // pred_check
          %p274 = pneg %p134
        $region18: #{tpu_custom_call.1} parent=11 // pred_check_branch
          %276 = sbr.rel (%p274) target = $region20
        $region19: #{tpu_custom_call.1} parent=11 // pred_region
          _
        $region20: #{tpu_custom_call.1} parent=11 // pred_fallthru
          _
        // Predicated region
        $region21: #{tpu_custom_call.1} parent=11 // pred_check
          %p277 = pneg %p155
        $region22: #{tpu_custom_call.1} parent=11 // pred_check_branch
          %279 = sbr.rel (%p277) target = $region24
        $region23: #{tpu_custom_call.1} parent=11 // pred_region
          %s281 = ssub.s32 768, 768
          %282 = vsyncadd [#allocation9], %s281
          %s283 = sshll.u32 [#allocation8], 4
          %s284 = int_to_ptr.vmem [resolvable:$true] %s283
          %289 = dma.hbm_to_vmem [thread:$0]  %s4, 768, %s284, [#allocation9], 64, 64, 4
        $region24: #{tpu_custom_call.1} parent=11 // pred_fallthru
          _
        // Predicated region
        $region25: #{tpu_custom_call.1} parent=11 // pred_check
          %p290 = pneg %p176
        $region26: #{tpu_custom_call.1} parent=11 // pred_check_branch
          %292 = sbr.rel (%p290) target = $region28
        $region27: #{tpu_custom_call.1} parent=11 // pred_region
          _
        $region28: #{tpu_custom_call.1} parent=11 // pred_fallthru
          _
        // Predicated region
        $region29: #{tpu_custom_call.1} parent=11 // pred_check
          %p293 = pneg %p197
        $region30: #{tpu_custom_call.1} parent=11 // pred_check_branch
          %295 = sbr.rel (%p293) target = $region32
        $region31: #{tpu_custom_call.1} parent=11 // pred_region
          _
        $region32: #{tpu_custom_call.1} parent=11 // pred_fallthru
          _
        // Predicated region
        $region33: #{tpu_custom_call.1} parent=11 // pred_check
          %p296 = pneg %p218
        $region34: #{tpu_custom_call.1} parent=11 // pred_check_branch
          %298 = sbr.rel (%p296) target = $region36
        $region35: #{tpu_custom_call.1} parent=11 // pred_region
          _
        $region36: #{tpu_custom_call.1} parent=11 // pred_fallthru
          _
      $region12: #{tpu_custom_call.1} parent=5 // pred_fallthru
        _
      %p299 = scmp.lt.s32.totalorder %s24, 2
      // Predicated region
      $region37: #{tpu_custom_call.1} parent=5 // pred_check
        %p300 = pneg %p299
      $region38: #{tpu_custom_call.1} parent=5 // pred_check_branch
        %302 = sbr.rel (%p300) target = $region40
      $region39: #{tpu_custom_call.1} parent=5 // pred_region
        // Predicated region
        $region41: #{tpu_custom_call.1} parent=39 // pred_check
          %p303 = pneg %p58
        $region42: #{tpu_custom_call.1} parent=39 // pred_check_branch
          %305 = sbr.rel (%p303) target = $region44
        $region43: #{tpu_custom_call.1} parent=39 // pred_region
          %s306 = sand.u32 %s48, 1
          %s307 = scalar_lea.sflag [#allocation3], %s306
          %s308 = sand.u32 %s48, 1
          %s309 = smul.addr %s308, 8
          %s310 = scalar_lea.vmem [#allocation2], %s309
          %s312 = ssub.s32 128, 128
          %313 = vsyncadd %s307, %s312
          %s314 = sadd.s32 %s32, %s31
          %s315 = smul.addr %s314, 128
          %s316 = scalar_lea.hbm %s0, %s315
          %s318 = sshll.u32 %s310, 4
          %s319 = int_to_ptr.vmem [resolvable:$true] %s318
          %321 = dma.hbm_to_vmem [thread:$0]  %s316, 128, %s319, %s307
        $region44: #{tpu_custom_call.1} parent=39 // pred_fallthru
          _
        // Predicated region
        $region45: #{tpu_custom_call.1} parent=39 // pred_check
          %p322 = pneg %p86
        $region46: #{tpu_custom_call.1} parent=39 // pred_check_branch
          %324 = sbr.rel (%p322) target = $region48
        $region47: #{tpu_custom_call.1} parent=39 // pred_region
          %s325 = sand.u32 %s24, 1
          %s326 = scalar_lea.sflag [#allocation6], %s325
          %s327 = sand.u32 %s76, 1
          %s328 = smul.addr %s327, 4
          %s329 = scalar_lea.vmem [#allocation5], %s328
          %s331 = ssub.s32 64, 64
          %332 = vsyncadd %s326, %s331
          %s333 = sadd.s32 %s32, %s31
          %s334 = smul.addr %s333, 64
          %s335 = scalar_lea.hbm %s1, %s334
          %s337 = sshll.u32 %s329, 4
          %s338 = int_to_ptr.vmem [resolvable:$true] %s337
          %340 = dma.hbm_to_vmem [thread:$0]  %s335, 64, %s338, %s326
        $region48: #{tpu_custom_call.1} parent=39 // pred_fallthru
          _
      $region40: #{tpu_custom_call.1} parent=5 // pred_fallthru
        _
      %p341 = scmp.le.s32.totalorder 1, %s24
      %p342 = scmp.lt.s32.totalorder %s24, 3
      %p343 = pnand %p341, %p342
      %p344 = pneg %p343
      // Predicated region
      $region49: #{tpu_custom_call.1} parent=5 // pred_check
        _
      $region50: #{tpu_custom_call.1} parent=5 // pred_check_branch
        %346 = sbr.rel (%p343) target = $region52
      $region51: #{tpu_custom_call.1} parent=5 // pred_region
        %s347 = ssub.s32 %s24, 1
        %s348 = sand.u32 %s51, 1
        %s349 = scalar_lea.sflag [#allocation3], %s348
        %s350 = sand.u32 %s51, 1
        %s351 = smul.addr %s350, 8
        %s352 = scalar_lea.vmem [#allocation2], %s351
        // Predicated region
        $region53: #{tpu_custom_call.1} parent=51 // pred_check
          %p353 = pneg %p64
        $region54: #{tpu_custom_call.1} parent=51 // pred_check_branch
          %355 = sbr.rel (%p353) target = $region56
        $region55: #{tpu_custom_call.1} parent=51 // pred_region
          %356 = dma.done %s349, 128
        $region56: #{tpu_custom_call.1} parent=51 // pred_fallthru
          _
        %s357 = sand.u32 %s29, 1
        %s358 = scalar_lea.sflag [#allocation6], %s357
        %s359 = sand.u32 %s79, 1
        %s360 = smul.addr %s359, 4
        %s361 = scalar_lea.vmem [#allocation5], %s360
        // Predicated region
        $region57: #{tpu_custom_call.1} parent=51 // pred_check
          %p362 = pneg %p92
        $region58: #{tpu_custom_call.1} parent=51 // pred_check_branch
          %364 = sbr.rel (%p362) target = $region60
        $region59: #{tpu_custom_call.1} parent=51 // pred_region
          %365 = dma.done %s358, 64
        $region60: #{tpu_custom_call.1} parent=51 // pred_fallthru
          _
        // Predicated region
        $region61: #{tpu_custom_call.1} parent=51 // pred_check
          %p366 = pneg %p113
        $region62: #{tpu_custom_call.1} parent=51 // pred_check_branch
          %368 = sbr.rel (%p366) target = $region64
        $region63: #{tpu_custom_call.1} parent=51 // pred_region
          %369 = dma.done [#allocation6], 768
        $region64: #{tpu_custom_call.1} parent=51 // pred_fallthru
          _
        // Predicated region
        $region65: #{tpu_custom_call.1} parent=51 // pred_check
          %p370 = pneg %p155
        $region66: #{tpu_custom_call.1} parent=51 // pred_check_branch
          %372 = sbr.rel (%p370) target = $region68
        $region67: #{tpu_custom_call.1} parent=51 // pred_region
          %373 = dma.done [#allocation9], 768
        $region68: #{tpu_custom_call.1} parent=51 // pred_fallthru
          _
        %s374 = sand.u32 %s51, 1
        %s375 = scalar_lea.sflag [#allocation3], %s374
        %s376 = sand.u32 %s51, 1
        %s377 = smul.addr %s376, 8
        %s378 = scalar_lea.vmem [#allocation2], %s377
        %p379 = pneg %p64
        %p380 = pneg %p61
        %s381 = sand.u32 %s29, 1
        %s382 = scalar_lea.sflag [#allocation6], %s381
        %s383 = sand.u32 %s79, 1
        %s384 = smul.addr %s383, 4
        %s385 = scalar_lea.vmem [#allocation5], %s384
        %p386 = pneg %p92
        %p387 = pneg %p89
        %p388 = pneg %p113
        %p389 = pneg %p110
        %p390 = pneg %p134
        %p391 = pneg %p131
        %p392 = pneg %p155
        %p393 = pneg %p152
        %p394 = pneg %p176
        %p395 = pneg %p173
        %p396 = pneg %p197
        %p397 = pneg %p194
        %p398 = pneg %p218
        %p399 = pneg %p215
        %p400 = pneg %p246
        %p401 = pneg %p243
        %s402 = sand.u32 %s233, 1
        %s403 = scalar_lea.sflag [#allocation4], %s402
        %s404 = sand.u32 %s233, 1
        %s405 = smul.addr %s404, 8
        %s406 = scalar_lea.vmem [#allocation10], %s405
        %s408 = smul.u32 %s34, 8
        %v409 = vld [vmem:[%s352] sm:$0xff]
        %v410 = vlaneseq
        %v411 = vshrl.u32 %v410, 7
        %v412 = vstv %s408
        %v413 = vadd.s32 %v412, %v411
        %vm414 = vcmp.lt.s32.totalorder %v413, 8
        %v415 = vsel %vm414, %v409, 0.0
        %v416 = vld [vmem:[%s361] sm:$0xf]
        %v418 = vrot.slane %v415, 6
        %vm420 = vcmask 1041408
        %v421 = vsel %vm420, %v416, %v418
        %v422 = vsel %vm420, %v418, %v416
        %v423 = vpack.c.bf16 %v422, %v421
        %v424 = vld [vmem:[%s3] sm:$0x1]
        %v425 = vld [vmem:[#allocation7] sm:$0xf]
        %v426 = vld [vmem:[#allocation7 + $0x4] sm:$0xf]
        %v427 = vld [vmem:[#allocation7 + $0x8] sm:$0xf]
        %v428 = vld [vmem:[#allocation7 + $0xc] sm:$0xf]
        %v433 = vunpack.c.l.b16 %v425
        %v434 = vunpack.c.l.b16 %v426
        %v435 = vunpack.c.l.b16 %v427
        %v436 = vunpack.c.l.b16 %v428
        %v437 = vpack.c.b16 %v434, %v433
        %v438 = vpack.c.b16 %v436, %v435
        %vm441 = vcmask 261120
        %v443 = vsel %vm441, %v423, 0
        %445 = vmatprep.subr.bf16.mxu0 0
        %446 = vmatpush1.bf16.msra.mxu0 %v437
        %447 = vmatprep.subr.bf16.mxu0 0
        %448 = vmatpush1.bf16.msra.mxu0 %v438
        %449 = vmatprep.subr.bf16.mxu0 0
        %450 = vmatpush1.bf16.msra.mxu0 0
        %451 = vmatprep.subr.bf16.mxu0 0
        %452 = vmatpush1.bf16.msra.mxu0 0
        %453 = vmatprep.subr.bf16.mxu0 0
        %454 = vmatpush1.bf16.msra.mxu0 0
        %455 = vmatprep.subr.bf16.mxu0 0
        %456 = vmatpush1.bf16.msra.mxu0 0
        %457 = vmatprep.subr.bf16.mxu0 0
        %458 = vmatpush1.bf16.msra.mxu0 0
        %459 = vmatprep.subr.bf16.mxu0 0
        %460 = vmatpush1.bf16.msra.mxu0 0
        %461 = vmatprep.subr.bf16.mxu0 0
        %462 = vmatpush1.bf16.msra.mxu0 0
        %463 = vmatprep.subr.bf16.mxu0 0
        %464 = vmatpush1.bf16.msra.mxu0 0
        %465 = vmatprep.subr.bf16.mxu0 0
        %466 = vmatpush1.bf16.msra.mxu0 0
        %467 = vmatprep.subr.bf16.mxu0 0
        %468 = vmatpush1.bf16.msra.mxu0 0
        %469 = vmatprep.subr.bf16.mxu0 0
        %470 = vmatpush1.bf16.msra.mxu0 0
        %471 = vmatprep.subr.bf16.mxu0 0
        %472 = vmatpush1.bf16.msra.mxu0 0
        %473 = vmatprep.subr.bf16.mxu0 0
        %474 = vmatpush1.bf16.msra.mxu0 0
        %475 = vmatprep.subr.bf16.mxu0 0
        %476 = vmatpush1.bf16.msra.mxu0 0
        %477 = vmatprep.mubr.bf16.mxu0 0
        %478 = vmatmul.mubr.bf16.gmra.mrb[0].mxu0 %v443
        %v479 = vpop.f32.mrb[0].mxu0
        %v480 = vadd.f32 0.0, %v479
        %v481 = vpop.f32.mrb[0].mxu0
        %v482 = vpop.f32.mrb[0].mxu0
        %v483 = vadd.f32 0.0, %v482
        %v484 = vpop.f32.mrb[0].mxu0
        %485 = vdwg.mxu0
        %v487 = vlaneseq
        %v488 = vshrl.u32 %v487, 7
        %v489 = vsub.s32 0, %v488
        %v490 = vrot.slane %v424, %v489
        %v492 = vadd.f32 %v490, %v480
        %v493 = vadd.f32 %v490, %v483
        %s494 = scalar_lea.vmem [#allocation7], 16
        %v495 = vld [vmem:[%s494] sm:$0xf]
        %v496 = vld [vmem:[%s494 + $0x4] sm:$0xf]
        %v497 = vld [vmem:[%s494 + $0x8] sm:$0xf]
        %v498 = vld [vmem:[%s494 + $0xc] sm:$0xf]
        %v499 = vshrl.u32 %v423, 16
        %v501 = vshll.u32 %v423, 16
        %v503 = vrot.slane %v501, 1
        %v504 = vor.u32 %v499, %v503
        %v509 = vunpack.c.l.b16 %v495
        %v510 = vunpack.c.l.b16 %v496
        %v511 = vunpack.c.l.b16 %v497
        %v512 = vunpack.c.l.b16 %v498
        %v513 = vpack.c.b16 %v510, %v509
        %v514 = vpack.c.b16 %v512, %v511
        %v518 = vsel %vm441, %v504, 0
        %520 = vmatprep.subr.bf16.mxu0 0
        %521 = vmatpush1.bf16.msra.mxu0 %v513
        %522 = vmatprep.subr.bf16.mxu0 0
        %523 = vmatpush1.bf16.msra.mxu0 %v514
        %524 = vmatprep.subr.bf16.mxu0 0
        %525 = vmatpush1.bf16.msra.mxu0 0
        %526 = vmatprep.subr.bf16.mxu0 0
        %527 = vmatpush1.bf16.msra.mxu0 0
        %528 = vmatprep.subr.bf16.mxu0 0
        %529 = vmatpush1.bf16.msra.mxu0 0
        %530 = vmatprep.subr.bf16.mxu0 0
        %531 = vmatpush1.bf16.msra.mxu0 0
        %532 = vmatprep.subr.bf16.mxu0 0
        %533 = vmatpush1.bf16.msra.mxu0 0
        %534 = vmatprep.subr.bf16.mxu0 0
        %535 = vmatpush1.bf16.msra.mxu0 0
        %536 = vmatprep.subr.bf16.mxu0 0
        %537 = vmatpush1.bf16.msra.mxu0 0
        %538 = vmatprep.subr.bf16.mxu0 0
        %539 = vmatpush1.bf16.msra.mxu0 0
        %540 = vmatprep.subr.bf16.mxu0 0
        %541 = vmatpush1.bf16.msra.mxu0 0
        %542 = vmatprep.subr.bf16.mxu0 0
        %543 = vmatpush1.bf16.msra.mxu0 0
        %544 = vmatprep.subr.bf16.mxu0 0
        %545 = vmatpush1.bf16.msra.mxu0 0
        %546 = vmatprep.subr.bf16.mxu0 0
        %547 = vmatpush1.bf16.msra.mxu0 0
        %548 = vmatprep.subr.bf16.mxu0 0
        %549 = vmatpush1.bf16.msra.mxu0 0
        %550 = vmatprep.subr.bf16.mxu0 0
        %551 = vmatpush1.bf16.msra.mxu0 0
        %552 = vmatprep.mubr.bf16.mxu0 0
        %553 = vmatmul.mubr.bf16.gmra.mrb[0].mxu0 %v518
        %v554 = vpop.f32.mrb[0].mxu0
        %v555 = vadd.f32 0.0, %v554
        %v556 = vpop.f32.mrb[0].mxu0
        %v557 = vpop.f32.mrb[0].mxu0
        %v558 = vadd.f32 0.0, %v557
        %v559 = vpop.f32.mrb[0].mxu0
        %560 = vdwg.mxu0
        %v561 = vadd.f32 %v492, %v555
        %v562 = vadd.f32 %v493, %v558
        %s563 = scalar_lea.vmem [#allocation7], 32
        %v564 = vld [vmem:[%s563] sm:$0xf]
        %v565 = vld [vmem:[%s563 + $0x4] sm:$0xf]
        %v566 = vld [vmem:[%s563 + $0x8] sm:$0xf]
        %v567 = vld [vmem:[%s563 + $0xc] sm:$0xf]
        %v569 = vrot.slane %v423, 1
        %v574 = vunpack.c.l.b16 %v564
        %v575 = vunpack.c.l.b16 %v565
        %v576 = vunpack.c.l.b16 %v566
        %v577 = vunpack.c.l.b16 %v567
        %v578 = vpack.c.b16 %v575, %v574
        %v579 = vpack.c.b16 %v577, %v576
        %v583 = vsel %vm441, %v569, 0
        %585 = vmatprep.subr.bf16.mxu0 0
        %586 = vmatpush1.bf16.msra.mxu0 %v578
        %587 = vmatprep.subr.bf16.mxu0 0
        %588 = vmatpush1.bf16.msra.mxu0 %v579
        %589 = vmatprep.subr.bf16.mxu0 0
        %590 = vmatpush1.bf16.msra.mxu0 0
        %591 = vmatprep.subr.bf16.mxu0 0
        %592 = vmatpush1.bf16.msra.mxu0 0
        %593 = vmatprep.subr.bf16.mxu0 0
        %594 = vmatpush1.bf16.msra.mxu0 0
        %595 = vmatprep.subr.bf16.mxu0 0
        %596 = vmatpush1.bf16.msra.mxu0 0
        %597 = vmatprep.subr.bf16.mxu0 0
        %598 = vmatpush1.bf16.msra.mxu0 0
        %599 = vmatprep.subr.bf16.mxu0 0
        %600 = vmatpush1.bf16.msra.mxu0 0
        %601 = vmatprep.subr.bf16.mxu0 0
        %602 = vmatpush1.bf16.msra.mxu0 0
        %603 = vmatprep.subr.bf16.mxu0 0
        %604 = vmatpush1.bf16.msra.mxu0 0
        %605 = vmatprep.subr.bf16.mxu0 0
        %606 = vmatpush1.bf16.msra.mxu0 0
        %607 = vmatprep.subr.bf16.mxu0 0
        %608 = vmatpush1.bf16.msra.mxu0 0
        %609 = vmatprep.subr.bf16.mxu0 0
        %610 = vmatpush1.bf16.msra.mxu0 0
        %611 = vmatprep.subr.bf16.mxu0 0
        %612 = vmatpush1.bf16.msra.mxu0 0
        %613 = vmatprep.subr.bf16.mxu0 0
        %614 = vmatpush1.bf16.msra.mxu0 0
        %615 = vmatprep.subr.bf16.mxu0 0
        %616 = vmatpush1.bf16.msra.mxu0 0
        %617 = vmatprep.mubr.bf16.mxu0 0
        %618 = vmatmul.mubr.bf16.gmra.mrb[0].mxu0 %v583
        %v619 = vpop.f32.mrb[0].mxu0
        %v620 = vadd.f32 0.0, %v619
        %v621 = vpop.f32.mrb[0].mxu0
        %v622 = vpop.f32.mrb[0].mxu0
        %v623 = vadd.f32 0.0, %v622
        %v624 = vpop.f32.mrb[0].mxu0
        %625 = vdwg.mxu0
        %v626 = vadd.f32 %v561, %v620
        %v627 = vadd.f32 %v562, %v623
        %v628 = vmin.f32 %v626, 20.0
        %v629 = vmin.f32 %v627, 20.0
        %v630 = vmul.f32 %v628, 1.442695
        %v631 = vpow.pop %v630
        %v632 = vmul.f32 %v629, 1.442695
        %v633 = vpow.pop %v632
        %v634 = vadd.f32 %v631, 2.0
        %v635 = vadd.f32 %v633, 2.0
        %v636 = vmul.f32 %v631, %v634
        %v637 = vmul.f32 %v633, %v635
        %v638 = vmul.f32 %v626, %v636
        %v639 = vmul.f32 %v627, %v637
        %v640 = vadd.f32 %v636, 2.0
        %v641 = vadd.f32 %v637, 2.0
        %v642 = vrcp.pop %v640
        %v643 = vrcp.pop %v641
        %v644 = vmul.f32 %v638, %v642
        %v645 = vmul.f32 %v639, %v643
        %s646 = ssub.s32 %s408, 1
        %v647 = vadd.s32 %v411, 8
        %v648 = vstv %s646
        %v649 = vadd.s32 %v648, %v411
        %v650 = vadd.s32 %v648, %v647
        %vm651 = vcmp.ge.s32.totalorder %v649, 0
        %vm652 = vcmp.ge.s32.totalorder %v650, 0
        %vm653 = vcmp.lt.s32.totalorder %v649, 8
        %vm654 = vcmp.lt.s32.totalorder %v650, 8
        %vm655 = vmand %vm651, %vm653
        %vm656 = vmand %vm652, %vm654
        %v657 = vsel %vm655, %v644, 0.0
        %v658 = vsel %vm656, %v645, 0.0
        %v659 = vpack.c.bf16 %v658, %v657
        %v660 = vld [vmem:[%s5] sm:$0x1]
        %v661 = vld [vmem:[#allocation8] sm:$0xf]
        %v662 = vld [vmem:[#allocation8 + $0x4] sm:$0xf]
        %v663 = vld [vmem:[#allocation8 + $0x8] sm:$0xf]
        %v664 = vld [vmem:[#allocation8 + $0xc] sm:$0xf]
        %v669 = vunpack.c.l.b16 %v661
        %v670 = vunpack.c.l.b16 %v662
        %v671 = vunpack.c.l.b16 %v663
        %v672 = vunpack.c.l.b16 %v664
        %v673 = vpack.c.b16 %v670, %v669
        %v674 = vpack.c.b16 %v672, %v671
        %v678 = vsel %vm441, %v659, 0
        %680 = vmatprep.subr.bf16.mxu0 0
        %681 = vmatpush1.bf16.msra.mxu0 %v673
        %682 = vmatprep.subr.bf16.mxu0 0
        %683 = vmatpush1.bf16.msra.mxu0 %v674
        %684 = vmatprep.subr.bf16.mxu0 0
        %685 = vmatpush1.bf16.msra.mxu0 0
        %686 = vmatprep.subr.bf16.mxu0 0
        %687 = vmatpush1.bf16.msra.mxu0 0
        %688 = vmatprep.subr.bf16.mxu0 0
        %689 = vmatpush1.bf16.msra.mxu0 0
        %690 = vmatprep.subr.bf16.mxu0 0
        %691 = vmatpush1.bf16.msra.mxu0 0
        %692 = vmatprep.subr.bf16.mxu0 0
        %693 = vmatpush1.bf16.msra.mxu0 0
        %694 = vmatprep.subr.bf16.mxu0 0
        %695 = vmatpush1.bf16.msra.mxu0 0
        %696 = vmatprep.subr.bf16.mxu0 0
        %697 = vmatpush1.bf16.msra.mxu0 0
        %698 = vmatprep.subr.bf16.mxu0 0
        %699 = vmatpush1.bf16.msra.mxu0 0
        %700 = vmatprep.subr.bf16.mxu0 0
        %701 = vmatpush1.bf16.msra.mxu0 0
        %702 = vmatprep.subr.bf16.mxu0 0
        %703 = vmatpush1.bf16.msra.mxu0 0
        %704 = vmatprep.subr.bf16.mxu0 0
        %705 = vmatpush1.bf16.msra.mxu0 0
        %706 = vmatprep.subr.bf16.mxu0 0
        %707 = vmatpush1.bf16.msra.mxu0 0
        %708 = vmatprep.subr.bf16.mxu0 0
        %709 = vmatpush1.bf16.msra.mxu0 0
        %710 = vmatprep.subr.bf16.mxu0 0
        %711 = vmatpush1.bf16.msra.mxu0 0
        %712 = vmatprep.mubr.bf16.mxu0 0
        %713 = vmatmul.mubr.bf16.gmra.mrb[0].mxu0 %v678
        %v714 = vpop.f32.mrb[0].mxu0
        %v715 = vadd.f32 0.0, %v714
        %v716 = vpop.f32.mrb[0].mxu0
        %v717 = vpop.f32.mrb[0].mxu0
        %v718 = vpop.f32.mrb[0].mxu0
        %719 = vdwg.mxu0
        %v721 = vlaneseq
        %v722 = vshrl.u32 %v721, 7
        %v723 = vsub.s32 0, %v722
        %v724 = vrot.slane %v660, %v723
        %v726 = vadd.f32 %v724, %v715
        %s727 = scalar_lea.vmem [#allocation8], 16
        %v728 = vld [vmem:[%s727] sm:$0xf]
        %v729 = vld [vmem:[%s727 + $0x4] sm:$0xf]
        %v730 = vld [vmem:[%s727 + $0x8] sm:$0xf]
        %v731 = vld [vmem:[%s727 + $0xc] sm:$0xf]
        %v732 = vshrl.u32 %v659, 16
        %v734 = vshll.u32 %v659, 16
        %v736 = vrot.slane %v734, 1
        %v737 = vor.u32 %v732, %v736
        %v742 = vunpack.c.l.b16 %v728
        %v743 = vunpack.c.l.b16 %v729
        %v744 = vunpack.c.l.b16 %v730
        %v745 = vunpack.c.l.b16 %v731
        %v746 = vpack.c.b16 %v743, %v742
        %v747 = vpack.c.b16 %v745, %v744
        %v751 = vsel %vm441, %v737, 0
        %753 = vmatprep.subr.bf16.mxu0 0
        %754 = vmatpush1.bf16.msra.mxu0 %v746
        %755 = vmatprep.subr.bf16.mxu0 0
        %756 = vmatpush1.bf16.msra.mxu0 %v747
        %757 = vmatprep.subr.bf16.mxu0 0
        %758 = vmatpush1.bf16.msra.mxu0 0
        %759 = vmatprep.subr.bf16.mxu0 0
        %760 = vmatpush1.bf16.msra.mxu0 0
        %761 = vmatprep.subr.bf16.mxu0 0
        %762 = vmatpush1.bf16.msra.mxu0 0
        %763 = vmatprep.subr.bf16.mxu0 0
        %764 = vmatpush1.bf16.msra.mxu0 0
        %765 = vmatprep.subr.bf16.mxu0 0
        %766 = vmatpush1.bf16.msra.mxu0 0
        %767 = vmatprep.subr.bf16.mxu0 0
        %768 = vmatpush1.bf16.msra.mxu0 0
        %769 = vmatprep.subr.bf16.mxu0 0
        %770 = vmatpush1.bf16.msra.mxu0 0
        %771 = vmatprep.subr.bf16.mxu0 0
        %772 = vmatpush1.bf16.msra.mxu0 0
        %773 = vmatprep.subr.bf16.mxu0 0
        %774 = vmatpush1.bf16.msra.mxu0 0
        %775 = vmatprep.subr.bf16.mxu0 0
        %776 = vmatpush1.bf16.msra.mxu0 0
        %777 = vmatprep.subr.bf16.mxu0 0
        %778 = vmatpush1.bf16.msra.mxu0 0
        %779 = vmatprep.subr.bf16.mxu0 0
        %780 = vmatpush1.bf16.msra.mxu0 0
        %781 = vmatprep.subr.bf16.mxu0 0
        %782 = vmatpush1.bf16.msra.mxu0 0
        %783 = vmatprep.subr.bf16.mxu0 0
        %784 = vmatpush1.bf16.msra.mxu0 0
        %785 = vmatprep.mubr.bf16.mxu0 0
        %786 = vmatmul.mubr.bf16.gmra.mrb[0].mxu0 %v751
        %v787 = vpop.f32.mrb[0].mxu0
        %v788 = vadd.f32 0.0, %v787
        %v789 = vpop.f32.mrb[0].mxu0
        %v790 = vpop.f32.mrb[0].mxu0
        %v791 = vpop.f32.mrb[0].mxu0
        %792 = vdwg.mxu0
        %v793 = vadd.f32 %v726, %v788
        %s794 = scalar_lea.vmem [#allocation8], 32
        %v795 = vld [vmem:[%s794] sm:$0xf]
        %v796 = vld [vmem:[%s794 + $0x4] sm:$0xf]
        %v797 = vld [vmem:[%s794 + $0x8] sm:$0xf]
        %v798 = vld [vmem:[%s794 + $0xc] sm:$0xf]
        %v800 = vrot.slane %v659, 1
        %v805 = vunpack.c.l.b16 %v795
        %v806 = vunpack.c.l.b16 %v796
        %v807 = vunpack.c.l.b16 %v797
        %v808 = vunpack.c.l.b16 %v798
        %v809 = vpack.c.b16 %v806, %v805
        %v810 = vpack.c.b16 %v808, %v807
        %v814 = vsel %vm441, %v800, 0
        %816 = vmatprep.subr.bf16.mxu0 0
        %817 = vmatpush1.bf16.msra.mxu0 %v809
        %818 = vmatprep.subr.bf16.mxu0 0
        %819 = vmatpush1.bf16.msra.mxu0 %v810
        %820 = vmatprep.subr.bf16.mxu0 0
        %821 = vmatpush1.bf16.msra.mxu0 0
        %822 = vmatprep.subr.bf16.mxu0 0
        %823 = vmatpush1.bf16.msra.mxu0 0
        %824 = vmatprep.subr.bf16.mxu0 0
        %825 = vmatpush1.bf16.msra.mxu0 0
        %826 = vmatprep.subr.bf16.mxu0 0
        %827 = vmatpush1.bf16.msra.mxu0 0
        %828 = vmatprep.subr.bf16.mxu0 0
        %829 = vmatpush1.bf16.msra.mxu0 0
        %830 = vmatprep.subr.bf16.mxu0 0
        %831 = vmatpush1.bf16.msra.mxu0 0
        %832 = vmatprep.subr.bf16.mxu0 0
        %833 = vmatpush1.bf16.msra.mxu0 0
        %834 = vmatprep.subr.bf16.mxu0 0
        %835 = vmatpush1.bf16.msra.mxu0 0
        %836 = vmatprep.subr.bf16.mxu0 0
        %837 = vmatpush1.bf16.msra.mxu0 0
        %838 = vmatprep.subr.bf16.mxu0 0
        %839 = vmatpush1.bf16.msra.mxu0 0
        %840 = vmatprep.subr.bf16.mxu0 0
        %841 = vmatpush1.bf16.msra.mxu0 0
        %842 = vmatprep.subr.bf16.mxu0 0
        %843 = vmatpush1.bf16.msra.mxu0 0
        %844 = vmatprep.subr.bf16.mxu0 0
        %845 = vmatpush1.bf16.msra.mxu0 0
        %846 = vmatprep.subr.bf16.mxu0 0
        %847 = vmatpush1.bf16.msra.mxu0 0
        %848 = vmatprep.mubr.bf16.mxu0 0
        %849 = vmatmul.mubr.bf16.gmra.mrb[0].mxu0 %v814
        %v850 = vpop.f32.mrb[0].mxu0
        %v851 = vadd.f32 0.0, %v850
        %v852 = vpop.f32.mrb[0].mxu0
        %v853 = vpop.f32.mrb[0].mxu0
        %v854 = vpop.f32.mrb[0].mxu0
        %855 = vdwg.mxu0
        %v856 = vadd.f32 %v793, %v851
        %v857 = vmin.f32 %v856, 20.0
        %v858 = vmul.f32 %v857, 1.442695
        %v859 = vpow.pop %v858
        %v860 = vadd.f32 %v859, 2.0
        %v861 = vmul.f32 %v859, %v860
        %v862 = vmul.f32 %v856, %v861
        %v863 = vadd.f32 %v861, 2.0
        %v864 = vrcp.pop %v863
        %v865 = vmul.f32 %v862, %v864
        %v866 = vpack.c.bf16 %v865, %v865
        %v867 = vld [vmem:[%s6] sm:$0xf]
        %v868 = vld [vmem:[%s6 + $0x4] sm:$0xf]
        %v869 = vld [vmem:[%s6 + $0x8] sm:$0xf]
        %v870 = vld [vmem:[%s6 + $0xc] sm:$0xf]
        %v871 = vld [vmem:[%s7] sm:$0x1]
        %v873 = vlaneseq
        %v874 = vshrl.u32 %v873, 7
        %v875 = vsub.s32 0, %v874
        %v876 = vrot.slane %v871, %v875
        %v882 = vunpack.c.l.b16 %v867
        %v883 = vunpack.c.l.b16 %v868
        %v884 = vunpack.c.l.b16 %v869
        %v885 = vunpack.c.l.b16 %v870
        %v886 = vpack.c.b16 %v883, %v882
        %v887 = vpack.c.b16 %v885, %v884
        %v891 = vsel %vm441, %v866, 0
        %893 = vmatprep.subr.bf16.mxu0 0
        %894 = vmatpush1.bf16.msra.mxu0 %v886
        %895 = vmatprep.subr.bf16.mxu0 0
        %896 = vmatpush1.bf16.msra.mxu0 %v887
        %897 = vmatprep.subr.bf16.mxu0 0
        %898 = vmatpush1.bf16.msra.mxu0 0
        %899 = vmatprep.subr.bf16.mxu0 0
        %900 = vmatpush1.bf16.msra.mxu0 0
        %901 = vmatprep.subr.bf16.mxu0 0
        %902 = vmatpush1.bf16.msra.mxu0 0
        %903 = vmatprep.subr.bf16.mxu0 0
        %904 = vmatpush1.bf16.msra.mxu0 0
        %905 = vmatprep.subr.bf16.mxu0 0
        %906 = vmatpush1.bf16.msra.mxu0 0
        %907 = vmatprep.subr.bf16.mxu0 0
        %908 = vmatpush1.bf16.msra.mxu0 0
        %909 = vmatprep.subr.bf16.mxu0 0
        %910 = vmatpush1.bf16.msra.mxu0 0
        %911 = vmatprep.subr.bf16.mxu0 0
        %912 = vmatpush1.bf16.msra.mxu0 0
        %913 = vmatprep.subr.bf16.mxu0 0
        %914 = vmatpush1.bf16.msra.mxu0 0
        %915 = vmatprep.subr.bf16.mxu0 0
        %916 = vmatpush1.bf16.msra.mxu0 0
        %917 = vmatprep.subr.bf16.mxu0 0
        %918 = vmatpush1.bf16.msra.mxu0 0
        %919 = vmatprep.subr.bf16.mxu0 0
        %920 = vmatpush1.bf16.msra.mxu0 0
        %921 = vmatprep.subr.bf16.mxu0 0
        %922 = vmatpush1.bf16.msra.mxu0 0
        %923 = vmatprep.subr.bf16.mxu0 0
        %924 = vmatpush1.bf16.msra.mxu0 0
        %925 = vmatprep.mubr.bf16.mxu0 0
        %926 = vmatmul.mubr.bf16.gmra.mrb[0].mxu0 %v891
        %v927 = vpop.f32.mrb[0].mxu0
        %v928 = vadd.f32 %v876, %v927
        %v929 = vpop.f32.mrb[0].mxu0
        %v930 = vpop.f32.mrb[0].mxu0
        %v931 = vpop.f32.mrb[0].mxu0
        %932 = vdwg.mxu0
        %v933 = vadd.f32 %v928, %v415
        %934 = vst.msk [vmem:[%s406] sm:$0xff] %vm441, %v933
        %s935 = sand.u32 %s233, 1
        %s936 = scalar_lea.sflag [#allocation4], %s935
        %s937 = sand.u32 %s233, 1
        %s938 = smul.addr %s937, 8
        %s939 = scalar_lea.vmem [#allocation10], %s938
        // Predicated region
        $region69: #{tpu_custom_call.1} parent=51 // pred_check
          %p940 = pneg %p243
        $region70: #{tpu_custom_call.1} parent=51 // pred_check_branch
          %942 = sbr.rel (%p940) target = $region72
        $region71: #{tpu_custom_call.1} parent=51 // pred_region
          %s944 = ssub.s32 128, 128
          %945 = vsyncadd %s936, %s944
          %s946 = sadd.s32 %s34, %s33
          %s947 = smul.addr %s946, 128
          %s948 = scalar_lea.hbm %s8, %s947
          %s950 = sshll.u32 %s939, 4
          %s951 = int_to_ptr.vmem [resolvable:$true] %s950
          %953 = dma.vmem_to_hbm [thread:$0]  %s951, 128, %s948, %s936
        $region72: #{tpu_custom_call.1} parent=51 // pred_fallthru
          _
      $region52: #{tpu_custom_call.1} parent=5 // pred_fallthru
        _
      %p954 = scmp.le.s32.totalorder 2, %s24
      // Predicated region
      $region73: #{tpu_custom_call.1} parent=5 // pred_check
        %p955 = pneg %p954
      $region74: #{tpu_custom_call.1} parent=5 // pred_check_branch
        %957 = sbr.rel (%p955) target = $region76
      $region75: #{tpu_custom_call.1} parent=5 // pred_region
        %s958 = ssub.s32 %s24, 2
        // Predicated region
        $region77: #{tpu_custom_call.1} parent=75 // pred_check
          %p959 = pneg %p249
        $region78: #{tpu_custom_call.1} parent=75 // pred_check_branch
          %961 = sbr.rel (%p959) target = $region80
        $region79: #{tpu_custom_call.1} parent=75 // pred_region
          %s962 = sand.u32 %s234, 1
          %s963 = scalar_lea.sflag [#allocation4], %s962
          %s964 = sand.u32 %s234, 1
          %s965 = smul.addr %s964, 8
          %s966 = scalar_lea.vmem [#allocation10], %s965
          %967 = dma.done %s963, 128
        $region80: #{tpu_custom_call.1} parent=75 // pred_fallthru
          _
      $region76: #{tpu_custom_call.1} parent=5 // pred_fallthru
        _
    $region6: #{tpu_custom_call.1} parent=1 // loop_footer
      %s28 = sadd.s32 1, %s24
    $region7: #{tpu_custom_call.1} parent=1 // loop_footer_branch
      %23 = sbr.rel target = $region3
    $region8: #{tpu_custom_call.1} parent=1 // loop_exit
      _
    %968 = vsyncpa [#allocation3], 1
    %s969 = scalar_lea.sflag [#allocation3], 1
    %970 = vsyncpa %s969, 1
    %971 = vsyncpa [#allocation6], 1
    %s972 = scalar_lea.sflag [#allocation6], 1
    %973 = vsyncpa %s972, 1
    %974 = vsyncpa [#allocation9], 1
    %975 = vsyncpa [#allocation4], 1
    %s976 = scalar_lea.sflag [#allocation4], 1
    %977 = vsyncpa %s976, 1

</llo_original>
